<compile_context>
chip_gen: v7x
topology: tpu7x:2x2x1
jax: 0.10.0
libtpu: 0.0.40
codegen_flags: <defaults>
</compile_context>

<pallas_src>
import functools

import jax
import jax.numpy as jnp
from jax.experimental import pallas as pl
from jax.experimental.pallas import tpu as pltpu


def _round_up(x, m):
    return ((x + m - 1) // m) * m


def _contrastive_loss_kernel(x1_ref, x2_ref, y_ref, out_ref, *, margin, true_b, tile_b):
    # Load native-dtype tiles, widen to f32 in registers for the math.
    x1 = x1_ref[...].astype(jnp.float32)          # (TB, F)
    x2 = x2_ref[...].astype(jnp.float32)          # (TB, F)
    y = y_ref[...]                                # (TB, 1) float32

    # F.pairwise_distance(p=2, eps=1e-6): ||x1 - x2 + eps||_2 over features.
    diff = x1 - x2 + jnp.float32(1e-6)
    d2 = jnp.sum(diff * diff, axis=-1, keepdims=True)     # (TB, 1)  XLU reduce
    d = jnp.sqrt(d2)
    hinge = jnp.maximum(jnp.float32(margin) - d, jnp.float32(0.0))

    # Use d2 directly for the (1 - y) term (no sqrt -> square round trip).
    per_row = (1.0 - y) * d2 + y * (hinge * hinge)         # (TB, 1)

    # Zero out padded rows (batch was padded up to a multiple of TB).
    row = (pl.program_id(0) * tile_b
           + jax.lax.broadcasted_iota(jnp.int32, (tile_b, 1), 0))
    out_ref[...] = jnp.where(row < true_b, per_row, jnp.float32(0.0))


def contrastive_loss(output1, output2, label, margin=2.0):
    """Pallas implementation of ContrastiveLoss.forward. Returns a scalar."""
    b, f = output1.shape
    assert output2.shape == (b, f)

    itemsize = max(output1.dtype.itemsize, output2.dtype.itemsize)

    # Tile the batch: biggest TB whose double-buffered working set fits a
    # conservative VMEM budget (v7x has only 64 MiB physical VMEM per TC).
    vmem_budget = 24 * 1024 * 1024
    bytes_per_row = 2 * 2 * f * itemsize + 2 * (4 + 4)     # 2 inputs x 2 bufs + label/out
    tb = vmem_budget // max(bytes_per_row, 1)
    tb = int(min(tb, 1024, _round_up(b, 8)))
    tb = max(8, (tb // 8) * 8)

    num_tiles = (b + tb - 1) // tb
    b_pad = num_tiles * tb

    if b_pad != b:
        pad = b_pad - b
        output1 = jnp.pad(output1, ((0, pad), (0, 0)))
        output2 = jnp.pad(output2, ((0, pad), (0, 0)))
        label = jnp.pad(label, ((0, pad),))
    label2d = label.astype(jnp.float32).reshape(b_pad, 1)

    kernel = functools.partial(
        _contrastive_loss_kernel, margin=float(margin), true_b=b, tile_b=tb)

    per_row = pl.pallas_call(
        kernel,
        out_shape=jax.ShapeDtypeStruct((b_pad, 1), jnp.float32),
        grid_spec=pltpu.PrefetchScalarGridSpec(
            num_scalar_prefetch=0,
            grid=(num_tiles,),
            in_specs=[
                pl.BlockSpec((tb, f), lambda i: (i, 0)),
                pl.BlockSpec((tb, f), lambda i: (i, 0)),
                pl.BlockSpec((tb, 1), lambda i: (i, 0)),
            ],
            out_specs=pl.BlockSpec((tb, 1), lambda i: (i, 0)),
        ),
        compiler_params=pltpu.CompilerParams(
            dimension_semantics=("parallel",),
            vmem_limit_bytes=40 * 1024 * 1024,
        ),
        cost_estimate=pl.CostEstimate(
            flops=6 * b * f,
            transcendentals=b,
            bytes_accessed=2 * b * f * itemsize + b * 4 + b_pad * 4,
        ),
    )(output1, output2, label2d)

    # Mean over the true batch (padded rows are exactly zero in the output).
    return jnp.sum(per_row) / jnp.float32(b)


def _reference_loss(output1, output2, label, margin=2.0):
    o1 = output1.astype(jnp.float32)
    o2 = output2.astype(jnp.float32)
    d = jnp.sqrt(jnp.sum((o1 - o2 + 1e-6) ** 2, axis=-1))
    return jnp.mean((1.0 - label) * d**2 + label * jnp.maximum(margin - d, 0.0) ** 2)


if __name__ == "__main__":
    key = jax.random.PRNGKey(0)
    k1, k2, k3 = jax.random.split(key, 3)

    # Small shapes consistent with the module: (batch, features) + (batch,).
    B, F = 8, 32
    output1 = jax.random.normal(k1, (B, F), dtype=jnp.float32)
    output2 = jax.random.normal(k2, (B, F), dtype=jnp.float32)
    label = jax.random.bernoulli(k3, 0.5, (B,)).astype(jnp.float32)

    loss = contrastive_loss(output1, output2, label, margin=2.0)
    jax.block_until_ready(loss)
    ref = _reference_loss(output1, output2, label, margin=2.0)
    assert jnp.allclose(loss, ref, rtol=1e-5, atol=1e-5), (loss, ref)

    # Exercise the padding / masking path (batch not a multiple of 8).
    B2, F2 = 37, 48
    kk = jax.random.split(jax.random.PRNGKey(1), 3)
    o1 = jax.random.normal(kk[0], (B2, F2), dtype=jnp.float32)
    o2 = jax.random.normal(kk[1], (B2, F2), dtype=jnp.float32)
    y2 = jax.random.bernoulli(kk[2], 0.5, (B2,)).astype(jnp.float32)
    loss2 = contrastive_loss(o1, o2, y2, margin=2.0)
    jax.block_until_ready(loss2)
    ref2 = _reference_loss(o1, o2, y2, margin=2.0)
    assert jnp.allclose(loss2, ref2, rtol=1e-5, atol=1e-5), (loss2, ref2)

    print("KERNEL_OK")
</pallas_src>

<mosaic_0001>
module attributes {stable_mosaic.version = 11 : i64} {
  func.func @_contrastive_loss_kernel(%arg0: i32, %arg1: memref<8x32xf32, #tpu.memory_space<vmem>>, %arg2: memref<8x32xf32, #tpu.memory_space<vmem>>, %arg3: memref<8x1xf32, #tpu.memory_space<vmem>>, %arg4: memref<8x1xf32, #tpu.memory_space<vmem>>) attributes {dimension_semantics = [#tpu.dimension_semantics<parallel>], iteration_bounds = array<i64: 1>, scalar_prefetch = 0 : i64, scratch_operands = 0 : i64, tpu.core_type = #tpu.core_type<tc>, window_params = [{transform_indices = @transform_0, window_bounds = array<i64: 8, 32>}, {transform_indices = @transform_1, window_bounds = array<i64: 8, 32>}, {transform_indices = @transform_2, window_bounds = array<i64: 8, 1>}, {transform_indices = @transform_3, window_bounds = array<i64: 8, 1>}]} {
    %c0 = arith.constant 0 : index
    %c0_0 = arith.constant 0 : index
    %0 = vector.load %arg1[%c0, %c0_0] : memref<8x32xf32, #tpu.memory_space<vmem>>, vector<8x32xf32>
    %c0_1 = arith.constant 0 : index
    %c0_2 = arith.constant 0 : index
    %1 = vector.load %arg2[%c0_1, %c0_2] : memref<8x32xf32, #tpu.memory_space<vmem>>, vector<8x32xf32>
    %c0_3 = arith.constant 0 : index
    %c0_4 = arith.constant 0 : index
    %2 = vector.load %arg3[%c0_3, %c0_4] : memref<8x1xf32, #tpu.memory_space<vmem>>, vector<8x1xf32>
    %3 = arith.subf %0, %1 : vector<8x32xf32>
    %cst = arith.constant 9.99999997E-7 : f32
    %4 = vector.broadcast %cst : f32 to vector<8x32xf32>
    %5 = arith.addf %3, %4 : vector<8x32xf32>
    %6 = arith.mulf %5, %5 : vector<8x32xf32>
    %cst_5 = arith.constant dense<0.000000e+00> : vector<8xf32>
    %7 = vector.multi_reduction <add>, %6, %cst_5 [1] : vector<8x32xf32> to vector<8xf32>
    %8 = vector.shape_cast %7 : vector<8xf32> to vector<8x1xf32>
    %9 = math.sqrt %8 : vector<8x1xf32>
    %cst_6 = arith.constant 2.000000e+00 : f32
    %10 = vector.broadcast %cst_6 : f32 to vector<8x1xf32>
    %11 = arith.subf %10, %9 : vector<8x1xf32>
    %cst_7 = arith.constant 0.000000e+00 : f32
    %12 = vector.broadcast %cst_7 : f32 to vector<8x1xf32>
    %13 = arith.maximumf %11, %12 : vector<8x1xf32>
    %cst_8 = arith.constant 1.000000e+00 : f32
    %14 = vector.broadcast %cst_8 : f32 to vector<8x1xf32>
    %15 = arith.subf %14, %2 : vector<8x1xf32>
    %16 = arith.mulf %15, %8 : vector<8x1xf32>
    %17 = arith.mulf %13, %13 : vector<8x1xf32>
    %18 = arith.mulf %2, %17 : vector<8x1xf32>
    %19 = arith.addf %16, %18 : vector<8x1xf32>
    %c8_i32 = arith.constant 8 : i32
    %20 = arith.muli %arg0, %c8_i32 : i32
    %21 = tpu.iota {dimensions = array<i32: 0>} : vector<8x1xi32>
    %22 = vector.broadcast %20 : i32 to vector<8x1xi32>
    %23 = arith.addi %22, %21 : vector<8x1xi32>
    %c8_i32_9 = arith.constant 8 : i32
    %24 = vector.broadcast %c8_i32_9 : i32 to vector<8x1xi32>
    %25 = arith.cmpi slt, %23, %24 : vector<8x1xi32>
    %cst_10 = arith.constant 0.000000e+00 : f32
    %26 = vector.broadcast %cst_10 : f32 to vector<8x1xf32>
    %27 = arith.select %25, %19, %26 : vector<8x1xi1>, vector<8x1xf32>
    %c0_11 = arith.constant 0 : index
    %c0_12 = arith.constant 0 : index
    %28 = vector.load %arg4[%c0_11, %c0_12] : memref<8x1xf32, #tpu.memory_space<vmem>>, vector<8x1xf32>
    tpu.vector_store %arg4[%c0_11, %c0_12], %27 {strides = array<i32>} : memref<8x1xf32, #tpu.memory_space<vmem>>, vector<8x1xf32>,
    return
  }
  func.func @transform_0(%arg0: i32) -> (i32, i32) {
    %c0_i32 = arith.constant 0 : i32
    %c0_i32_0 = arith.constant 0 : i32
    return %arg0, %c0_i32 : i32, i32
  }
  func.func @transform_1(%arg0: i32) -> (i32, i32) {
    %c0_i32 = arith.constant 0 : i32
    %c0_i32_0 = arith.constant 0 : i32
    return %arg0, %c0_i32 : i32, i32
  }
  func.func @transform_2(%arg0: i32) -> (i32, i32) {
    %c0_i32 = arith.constant 0 : i32
    %c0_i32_0 = arith.constant 0 : i32
    return %arg0, %c0_i32 : i32, i32
  }
  func.func @transform_3(%arg0: i32) -> (i32, i32) {
    %c0_i32 = arith.constant 0 : i32
    %c0_i32_0 = arith.constant 0 : i32
    return %arg0, %c0_i32 : i32, i32
  }
}

</mosaic_0001>

<llo_original>
// kernel: tpu_custom_call.1
$region0: #{tpu_custom_call.1}
  #allocation0 [shape = 'u32[]', space=smem, size = 0x4, offset = 0x4, fixed_abs, tag = 'smem constant byte address 0x4 - core index']
  #allocation1 [shape = 'u32[144,128]{1,0:T(1,128)}', space=vmem, size = 0x12000, scoped, tag = 'internal scratch']
  %s0 = inlined_call_operand.vmem [shape: f32[8,32], index: 0, kind: input, shape index: {}]
  %s1 = inlined_call_operand.hbm [shape: f32[8,32], index: 1, kind: input, shape index: {}]
  %s2 = inlined_call_operand.vmem [shape: f32[8,1], index: 2, kind: input, shape index: {}]
  %s3 = inlined_call_operand.vmem [shape: f32[8,1], index: 3, kind: output, shape index: {}]
  %s4 = sld [smem:[#allocation0]]
  $region26: #{tpu_custom_call.1} parent=0
    _
  %s6 = ssub.s32 1, %s4
  %s7 = scalar_select 0, %s6, %s4
  $region1: #{tpu_custom_call.1} parent=0
    #allocation2 [shape = 'u8[4096]{0}', space=vmem, size = 0x1000, scoped, tag = 'input window, operand 1, single buffered']
    #allocation3 [shape = 's32[1]{0}', space=sflag, size = 0x4, scoped, tag = 'scoped memory for tpu_custom_call.1']
    %8 = vsyncpa [#allocation3], 0
    // Predicated region
    $region2: #{tpu_custom_call.1} parent=1 // pred_check
      _
    $region3: #{tpu_custom_call.1} parent=1 // pred_check_branch
      %10 = sbr.rel (0) target = $region5
    $region4: #{tpu_custom_call.1} parent=1 // pred_region
      _
    $region5: #{tpu_custom_call.1} parent=1 // pred_fallthru
      _
    // Predicated region
    $region6: #{tpu_custom_call.1} parent=1 // pred_check
      _
    $region7: #{tpu_custom_call.1} parent=1 // pred_check_branch
      %12 = sbr.rel (0) target = $region9
    $region8: #{tpu_custom_call.1} parent=1 // pred_region
      %s14 = ssub.s32 128, 128
      %15 = vsyncadd [#allocation3], %s14
      %s17 = sshll.u32 [#allocation2], 4
      %s18 = int_to_ptr.vmem [resolvable:$true] %s17
      %20 = dma.hbm_to_vmem [thread:$0]  %s1, 128, %s18, [#allocation3]
    $region9: #{tpu_custom_call.1} parent=1 // pred_fallthru
      _
    // Predicated region
    $region10: #{tpu_custom_call.1} parent=1 // pred_check
      _
    $region11: #{tpu_custom_call.1} parent=1 // pred_check_branch
      %22 = sbr.rel (0) target = $region13
    $region12: #{tpu_custom_call.1} parent=1 // pred_region
      _
    $region13: #{tpu_custom_call.1} parent=1 // pred_fallthru
      _
    // Predicated region
    $region14: #{tpu_custom_call.1} parent=1 // pred_check
      _
    $region15: #{tpu_custom_call.1} parent=1 // pred_check_branch
      %24 = sbr.rel (0) target = $region17
    $region16: #{tpu_custom_call.1} parent=1 // pred_region
      %25 = dma.done [#allocation3], 128
    $region17: #{tpu_custom_call.1} parent=1 // pred_fallthru
      _
    %v26 = vld [vmem:[%s0] sm:$0xff]
    %v27 = vld [vmem:[#allocation2] sm:$0xff]
    %v28 = vld [vmem:[%s2] sm:$0xff]
    %v29 = vsub.f32 %v26, %v27
    %v30 = vadd.f32 %v29, 1e-06
    %v31 = vmul.f32 %v30, %v30
    %vm32 = vcmask 261120
    %v33 = vsel %vm32, %v31, 0.0
    %34 = vadd.xlane.f32.xlu0 %v33
    %v35 = vpop.xlane.xlu0 %34
    %v36 = vrsqrt.pop %v35
    %v37 = vmul.f32 %v35, %v36
    %vm38 = vcmp.eq.f32.partialorder %v35, inf
    %v39 = vsel %vm38, %v35, %v37
    %vm40 = vcmp.eq.f32.partialorder %v35, 0.0
    %v41 = vand.u32 %v35, 2147483648
    %v42 = vsel %vm40, %v41, %v39
    %v43 = vsub.f32 2.0, %v42
    %v44 = vmax.f32 %v43, 0.0
    %v45 = vsub.f32 1.0, %v28
    %v46 = vmul.f32 %v45, %v35
    %v47 = vmul.f32 %v44, %v44
    %v48 = vmul.f32 %v28, %v47
    %v49 = vadd.f32 %v46, %v48
    %s50 = smul.u32 0, 8
    %v51 = vlaneseq
    %v52 = vshrl.u32 %v51, 7
    %v53 = vstv %s50
    %v54 = vadd.s32 %v53, %v52
    %vm55 = vcmp.lt.s32.totalorder %v54, 8
    %v56 = vsel %vm55, %v49, 0.0
    %vm57 = vcmask 7168
    %58 = vst.msk [vmem:[%s3] sm:$0xff] %vm57, %v56
    // Predicated region
    $region18: #{tpu_custom_call.1} parent=1 // pred_check
      _
    $region19: #{tpu_custom_call.1} parent=1 // pred_check_branch
      %60 = sbr.rel (0) target = $region21
    $region20: #{tpu_custom_call.1} parent=1 // pred_region
      _
    $region21: #{tpu_custom_call.1} parent=1 // pred_fallthru
      _
    // Predicated region
    $region22: #{tpu_custom_call.1} parent=1 // pred_check
      _
    $region23: #{tpu_custom_call.1} parent=1 // pred_check_branch
      %62 = sbr.rel (0) target = $region25
    $region24: #{tpu_custom_call.1} parent=1 // pred_region
      _
    $region25: #{tpu_custom_call.1} parent=1 // pred_fallthru
      _
    %63 = vsyncpa [#allocation3], 1

</llo_original>
